<compile_context>
chip_gen: v5e
topology: v5e:2x2
jax: 0.10.0
libtpu: 0.0.40
codegen_flags: <defaults>
</compile_context>

<pallas_src>
import functools

import jax
import jax.numpy as jnp
from jax.experimental import pallas as pl
from jax.experimental.pallas import tpu as pltpu

_LANE = 128


def _round_up(v, m):
    return (v + m - 1) // m * m


# ----------------------------------------------------------------------------------
# Kernels
# ----------------------------------------------------------------------------------
def _se_fused_kernel(x_ref, w1_ref, b1_ref, w2_ref, b2_ref, o_ref, *, inv_hw):
    """One batch element per grid step: pool + FC + sigmoid + broadcast multiply."""
    x = x_ref[...]                                              # (1, C, HWp)
    # Global average pool over spatial (lane reduce); keep C on the sublane axis.
    pooled = jnp.sum(x, axis=-1, keepdims=True)[0] * inv_hw     # (C, 1)
    # fc[0]: Linear(C -> hidden) on VPU/XLU (MXU is wasteful for a (1, C) operand).
    h = jnp.sum(pooled * w1_ref[...], axis=0, keepdims=True) + b1_ref[...]   # (1, hidden)
    h = jnp.clip(h, 0.0, 6.0)                                   # ReLU6
    # fc[2]: Linear(hidden -> C); w2 stored as (C, hidden) -> lane reduce, no transpose.
    y = jnp.sum(h * w2_ref[...], axis=-1, keepdims=True) + b2_ref[...]       # (C, 1)
    y = jax.nn.sigmoid(y)
    # x * y.view(1, C, 1): broadcast over the spatial lanes.
    o_ref[...] = x * y[None, :, :]


def _se_scale_kernel(x_ref, w1_ref, b1_ref, w2_ref, b2_ref, y_ref, *, inv_hw):
    """Split path, pass 1: accumulate spatial sums over HW tiles, then compute scales."""
    t = pl.program_id(1)

    @pl.when(t == 0)
    def _init():
        y_ref[...] = jnp.zeros_like(y_ref)

    # Partial spatial sum for this HW tile (padded lanes are zero -> no effect).
    y_ref[...] += jnp.sum(x_ref[...], axis=-1, keepdims=True)   # (1, C, 1)

    @pl.when(t == pl.num_programs(1) - 1)
    def _finalize():
        pooled = y_ref[0] * inv_hw                                              # (C, 1)
        h = jnp.sum(pooled * w1_ref[...], axis=0, keepdims=True) + b1_ref[...]  # (1, hidden)
        h = jnp.clip(h, 0.0, 6.0)
        y = jnp.sum(h * w2_ref[...], axis=-1, keepdims=True) + b2_ref[...]      # (C, 1)
        y_ref[...] = jax.nn.sigmoid(y)[None]                                    # (1, C, 1)


def _se_apply_kernel(x_ref, y_ref, o_ref):
    """Split path, pass 2: out = x * scale (broadcast over spatial lanes)."""
    o_ref[...] = x_ref[...] * y_ref[...]


# ----------------------------------------------------------------------------------
# Wrapper
# ----------------------------------------------------------------------------------
def se_mobile(x_nchw, w1, b1, w2, b2, *, hw_tile=None, donate_x=False,
              vmem_block_budget_bytes=20 * 1024 * 1024):
    """x_nchw: (B, C, H, W) float32. Returns (B, C, H, W) float32.

    Weight layouts: w1 (C, hidden), b1 (1, hidden), w2 (C, hidden), b2 (C, 1).
    """
    B, C, H, W = x_nchw.shape
    hidden = w1.shape[1]
    HW = H * W
    inv_hw = 1.0 / float(HW)
    dtype = x_nchw.dtype
    itemsize = jnp.dtype(dtype).itemsize

    # ---- spatial tile choice: keep 2x double-buffered (in + out) f32 blocks in budget
    HWp = _round_up(HW, _LANE)                       # lane-dense spatial extent
    if hw_tile is None:
        max_tile = (vmem_block_budget_bytes // (4 * C * itemsize)) // _LANE * _LANE
        max_tile = max(_LANE, max_tile)
        hw_tile = min(HWp, max_tile)
    hw_tile = _round_up(hw_tile, _LANE)
    HWp = _round_up(HWp, hw_tile)
    n_hw = HWp // hw_tile

    # ---- layout plumbing only (no compute hoisted out of the kernel)
    x_flat = x_nchw.reshape(B, C, HW)
    if HWp != HW:
        x_flat = jnp.pad(x_flat, ((0, 0), (0, 0), (0, HWp - HW)))

    io_alias = {0: 0} if donate_x else {}
    vmem_limit = 32 * 1024 * 1024   # raise v5e's 16 MiB default; safe on v6e/v7x

    if n_hw == 1:
        # -------- fused path: one pass over x ---------------------------------------
        out_flat = pl.pallas_call(
            functools.partial(_se_fused_kernel, inv_hw=inv_hw),
            out_shape=jax.ShapeDtypeStruct((B, C, HWp), dtype),
            grid=(B,),
            in_specs=[
                pl.BlockSpec((1, C, HWp), lambda b: (b, 0, 0)),
                pl.BlockSpec((C, hidden), lambda b: (0, 0)),
                pl.BlockSpec((1, hidden), lambda b: (0, 0)),
                pl.BlockSpec((C, hidden), lambda b: (0, 0)),
                pl.BlockSpec((C, 1), lambda b: (0, 0)),
            ],
            out_specs=pl.BlockSpec((1, C, HWp), lambda b: (b, 0, 0)),
            compiler_params=pltpu.CompilerParams(
                dimension_semantics=("parallel",),
                vmem_limit_bytes=vmem_limit),
            cost_estimate=pl.CostEstimate(
                flops=2 * B * C * HWp + 4 * B * C * hidden,
                transcendentals=B * C,
                bytes_accessed=(2 * B * C * HWp + 2 * C * hidden + hidden + C) * itemsize),
            input_output_aliases=io_alias,
        )(x_flat, w1, b1, w2, b2)
    else:
        # -------- split path: pass 1 computes per-(b, c) scales ---------------------
        scales = pl.pallas_call(
            functools.partial(_se_scale_kernel, inv_hw=inv_hw),
            out_shape=jax.ShapeDtypeStruct((B, C, 1), jnp.float32),
            grid=(B, n_hw),
            in_specs=[
                pl.BlockSpec((1, C, hw_tile), lambda b, t: (b, 0, t)),
                pl.BlockSpec((C, hidden), lambda b, t: (0, 0)),
                pl.BlockSpec((1, hidden), lambda b, t: (0, 0)),
                pl.BlockSpec((C, hidden), lambda b, t: (0, 0)),
                pl.BlockSpec((C, 1), lambda b, t: (0, 0)),
            ],
            out_specs=pl.BlockSpec((1, C, 1), lambda b, t: (b, 0, 0)),
            compiler_params=pltpu.CompilerParams(
                dimension_semantics=("parallel", "arbitrary"),
                vmem_limit_bytes=vmem_limit),
            cost_estimate=pl.CostEstimate(
                flops=B * C * HWp + 4 * B * C * hidden,
                transcendentals=B * C,
                bytes_accessed=(B * C * HWp + B * C) * itemsize),
        )(x_flat, w1, b1, w2, b2)

        # -------- split path: pass 2 broadcast-multiplies ----------------------------
        out_flat = pl.pallas_call(
            _se_apply_kernel,
            out_shape=jax.ShapeDtypeStruct((B, C, HWp), dtype),
            grid=(B, n_hw),
            in_specs=[
                pl.BlockSpec((1, C, hw_tile), lambda b, t: (b, 0, t)),
                pl.BlockSpec((1, C, 1), lambda b, t: (b, 0, 0)),
            ],
            out_specs=pl.BlockSpec((1, C, hw_tile), lambda b, t: (b, 0, t)),
            compiler_params=pltpu.CompilerParams(
                dimension_semantics=("parallel", "parallel"),
                vmem_limit_bytes=vmem_limit),
            cost_estimate=pl.CostEstimate(
                flops=B * C * HWp,
                transcendentals=0,
                bytes_accessed=(2 * B * C * HWp + B * C) * itemsize),
            input_output_aliases=io_alias,
        )(x_flat, scales)

    return out_flat[:, :, :HW].reshape(B, C, H, W)


# ----------------------------------------------------------------------------------
# Params (deterministic synthetic init matching nn.Linear shapes)
# ----------------------------------------------------------------------------------
def init_params(key, channel, reduction=4):
    """Layouts chosen for the kernel:
       w1 (C, hidden)  = transpose of torch fc[0].weight
       b1 (1, hidden)
       w2 (C, hidden)  = torch fc[2].weight native layout (out=C, in=hidden)
       b2 (C, 1)
    """
    hidden = channel // reduction
    k1, k2, k3, k4 = jax.random.split(key, 4)
    bound1 = 1.0 / (channel ** 0.5)
    bound2 = 1.0 / (hidden ** 0.5)
    w1 = jax.random.uniform(k1, (channel, hidden), jnp.float32, -bound1, bound1)
    b1 = jax.random.uniform(k2, (1, hidden), jnp.float32, -bound1, bound1)
    w2 = jax.random.uniform(k3, (channel, hidden), jnp.float32, -bound2, bound2)
    b2 = jax.random.uniform(k4, (channel, 1), jnp.float32, -bound2, bound2)
    return w1, b1, w2, b2


if __name__ == "__main__":
    key = jax.random.PRNGKey(0)
    kx, kp = jax.random.split(key)

    B, C, H, W = 2, 8, 16, 16     # channel=8, reduction=4 -> hidden=2
    x = jax.random.normal(kx, (B, C, H, W), dtype=jnp.float32)
    w1, b1, w2, b2 = init_params(kp, C, reduction=4)

    # Reference in plain JAX (same semantics as the PyTorch forward).
    pooled = jnp.mean(x, axis=(2, 3))                              # (B, C)
    h = jnp.clip(pooled @ w1 + b1, 0.0, 6.0)                       # (B, hidden)
    yv = jax.nn.sigmoid(h @ w2.T + b2[:, 0][None, :])              # (B, C)
    ref = x * yv[:, :, None, None]

    # Fused path (whole per-batch spatial slab fits the VMEM budget).
    out = jax.block_until_ready(se_mobile(x, w1, b1, w2, b2))
    assert jnp.allclose(out, ref, atol=1e-5, rtol=1e-5), "fused path mismatch"

    # Also exercise the HW-tiled two-pass path by forcing a small spatial tile.
    out2 = jax.block_until_ready(se_mobile(x, w1, b1, w2, b2, hw_tile=128))
    assert jnp.allclose(out2, ref, atol=1e-5, rtol=1e-5), "split path mismatch"

    print("KERNEL_OK")
</pallas_src>

<mosaic_0001>
module attributes {stable_mosaic.version = 11 : i64} {
  func.func @_se_fused_kernel(%arg0: i32, %arg1: memref<1x8x256xf32, #tpu.memory_space<vmem>>, %arg2: memref<8x2xf32, #tpu.memory_space<vmem>>, %arg3: memref<1x2xf32, #tpu.memory_space<vmem>>, %arg4: memref<8x2xf32, #tpu.memory_space<vmem>>, %arg5: memref<8x1xf32, #tpu.memory_space<vmem>>, %arg6: memref<1x8x256xf32, #tpu.memory_space<vmem>>) attributes {dimension_semantics = [#tpu.dimension_semantics<parallel>], iteration_bounds = array<i64: 2>, scalar_prefetch = 0 : i64, scratch_operands = 0 : i64, tpu.core_type = #tpu.core_type<tc>, window_params = [{transform_indices = @transform_0, window_bounds = array<i64: 1, 8, 256>}, {pipeline_mode = #tpu.pipeline_mode<synchronous>, transform_indices = @transform_1, window_bounds = array<i64: 8, 2>}, {pipeline_mode = #tpu.pipeline_mode<synchronous>, transform_indices = @transform_2, window_bounds = array<i64: 1, 2>}, {pipeline_mode = #tpu.pipeline_mode<synchronous>, transform_indices = @transform_3, window_bounds = array<i64: 8, 2>}, {pipeline_mode = #tpu.pipeline_mode<synchronous>, transform_indices = @transform_4, window_bounds = array<i64: 8, 1>}, {transform_indices = @transform_5, window_bounds = array<i64: 1, 8, 256>}]} {
    %c0 = arith.constant 0 : index
    %c0_0 = arith.constant 0 : index
    %c0_1 = arith.constant 0 : index
    %0 = vector.load %arg1[%c0, %c0_0, %c0_1] : memref<1x8x256xf32, #tpu.memory_space<vmem>>, vector<1x8x256xf32>
    %cst = arith.constant dense<0.000000e+00> : vector<1x8xf32>
    %1 = vector.multi_reduction <add>, %0, %cst [2] : vector<1x8x256xf32> to vector<1x8xf32>
    %2 = vector.shape_cast %1 : vector<1x8xf32> to vector<1x8x1xf32>
    %3 = vector.shape_cast %2 : vector<1x8x1xf32> to vector<8x1xf32>
    %cst_2 = arith.constant 3.906250e-03 : f32
    %4 = vector.broadcast %cst_2 : f32 to vector<8x1xf32>
    %5 = arith.mulf %3, %4 : vector<8x1xf32>
    %c0_3 = arith.constant 0 : index
    %c0_4 = arith.constant 0 : index
    %6 = vector.load %arg2[%c0_3, %c0_4] : memref<8x2xf32, #tpu.memory_space<vmem>>, vector<8x2xf32>
    %7 = vector.broadcast %5 : vector<8x1xf32> to vector<8x2xf32>
    %8 = arith.mulf %7, %6 : vector<8x2xf32>
    %cst_5 = arith.constant dense<0.000000e+00> : vector<2xf32>
    %9 = vector.multi_reduction <add>, %8, %cst_5 [0] : vector<8x2xf32> to vector<2xf32>
    %10 = vector.shape_cast %9 : vector<2xf32> to vector<1x2xf32>
    %c0_6 = arith.constant 0 : index
    %c0_7 = arith.constant 0 : index
    %11 = vector.load %arg3[%c0_6, %c0_7] : memref<1x2xf32, #tpu.memory_space<vmem>>, vector<1x2xf32>
    %12 = arith.addf %10, %11 : vector<1x2xf32>
    %cst_8 = arith.constant 0.000000e+00 : f32
    %cst_9 = arith.constant 6.000000e+00 : f32
    %13 = vector.broadcast %cst_8 : f32 to vector<1x2xf32>
    %14 = arith.maximumf %13, %12 : vector<1x2xf32>
    %15 = vector.broadcast %cst_9 : f32 to vector<1x2xf32>
    %16 = arith.minimumf %15, %14 : vector<1x2xf32>
    %c0_10 = arith.constant 0 : index
    %c0_11 = arith.constant 0 : index
    %17 = vector.load %arg4[%c0_10, %c0_11] : memref<8x2xf32, #tpu.memory_space<vmem>>, vector<8x2xf32>
    %18 = vector.broadcast %16 : vector<1x2xf32> to vector<8x2xf32>
    %19 = arith.mulf %18, %17 : vector<8x2xf32>
    %cst_12 = arith.constant dense<0.000000e+00> : vector<8xf32>
    %20 = vector.multi_reduction <add>, %19, %cst_12 [1] : vector<8x2xf32> to vector<8xf32>
    %21 = vector.shape_cast %20 : vector<8xf32> to vector<8x1xf32>
    %c0_13 = arith.constant 0 : index
    %c0_14 = arith.constant 0 : index
    %22 = vector.load %arg5[%c0_13, %c0_14] : memref<8x1xf32, #tpu.memory_space<vmem>>, vector<8x1xf32>
    %23 = arith.addf %21, %22 : vector<8x1xf32>
    %24 = arith.negf %23 : vector<8x1xf32>
    %25 = math.exp %24 : vector<8x1xf32>
    %cst_15 = arith.constant 1.000000e+00 : f32
    %26 = vector.broadcast %cst_15 : f32 to vector<8x1xf32>
    %27 = arith.addf %26, %25 : vector<8x1xf32>
    %28 = arith.divf %26, %27 : vector<8x1xf32>
    %29 = vector.shape_cast %28 : vector<8x1xf32> to vector<1x8x1xf32>
    %30 = vector.broadcast %29 : vector<1x8x1xf32> to vector<1x8x256xf32>
    %31 = arith.mulf %0, %30 : vector<1x8x256xf32>
    %c0_16 = arith.constant 0 : index
    %c0_17 = arith.constant 0 : index
    %c0_18 = arith.constant 0 : index
    %32 = vector.load %arg6[%c0_16, %c0_17, %c0_18] : memref<1x8x256xf32, #tpu.memory_space<vmem>>, vector<1x8x256xf32>
    tpu.vector_store %arg6[%c0_16, %c0_17, %c0_18], %31 {strides = array<i32>} : memref<1x8x256xf32, #tpu.memory_space<vmem>>, vector<1x8x256xf32>,
    return
  }
  func.func @transform_0(%arg0: i32) -> (i32, i32, i32) {
    %c0_i32 = arith.constant 0 : i32
    %c0_i32_0 = arith.constant 0 : i32
    %c0_i32_1 = arith.constant 0 : i32
    return %arg0, %c0_i32, %c0_i32_0 : i32, i32, i32
  }
  func.func @transform_1(%arg0: i32) -> (i32, i32) {
    %c0_i32 = arith.constant 0 : i32
    %c0_i32_0 = arith.constant 0 : i32
    %c0_i32_1 = arith.constant 0 : i32
    return %c0_i32, %c0_i32_0 : i32, i32
  }
  func.func @transform_2(%arg0: i32) -> (i32, i32) {
    %c0_i32 = arith.constant 0 : i32
    %c0_i32_0 = arith.constant 0 : i32
    %c0_i32_1 = arith.constant 0 : i32
    return %c0_i32, %c0_i32_0 : i32, i32
  }
  func.func @transform_3(%arg0: i32) -> (i32, i32) {
    %c0_i32 = arith.constant 0 : i32
    %c0_i32_0 = arith.constant 0 : i32
    %c0_i32_1 = arith.constant 0 : i32
    return %c0_i32, %c0_i32_0 : i32, i32
  }
  func.func @transform_4(%arg0: i32) -> (i32, i32) {
    %c0_i32 = arith.constant 0 : i32
    %c0_i32_0 = arith.constant 0 : i32
    %c0_i32_1 = arith.constant 0 : i32
    return %c0_i32, %c0_i32_0 : i32, i32
  }
  func.func @transform_5(%arg0: i32) -> (i32, i32, i32) {
    %c0_i32 = arith.constant 0 : i32
    %c0_i32_0 = arith.constant 0 : i32
    %c0_i32_1 = arith.constant 0 : i32
    return %arg0, %c0_i32, %c0_i32_0 : i32, i32, i32
  }
}

</mosaic_0001>

<llo_original>
// kernel: tpu_custom_call.1
$region0: #{tpu_custom_call.1}
  #allocation0 [shape = 'u32[]', space=smem, size = 0x4, offset = 0x4, fixed_abs, tag = 'smem constant byte address 0x4 - core index']
  #allocation1 [shape = 'u32[72,128]{1,0:T(1,128)}', space=vmem, size = 0x9000, scoped, tag = 'internal scratch']
  %s0 = inlined_call_operand.hbm [shape: f32[2,8,256], index: 0, kind: input, shape index: {}]
  %s1 = inlined_call_operand.vmem [shape: f32[8,2], index: 1, kind: input, shape index: {}]
  %s2 = inlined_call_operand.vmem [shape: f32[1,2], index: 2, kind: input, shape index: {}]
  %s3 = inlined_call_operand.vmem [shape: f32[8,2], index: 3, kind: input, shape index: {}]
  %s4 = inlined_call_operand.vmem [shape: f32[8,1], index: 4, kind: input, shape index: {}]
  %s5 = inlined_call_operand.hbm [shape: f32[2,8,256], index: 5, kind: output, shape index: {}]
  %s6 = sld [smem:[#allocation0]]
  $region57: #{tpu_custom_call.1} parent=0
    _
  %s8 = ssub.s32 1, %s6
  %s9 = scalar_select 0, %s8, %s6
  $region1: #{tpu_custom_call.1} parent=0
    #allocation2 [shape = 'u8[16384]{0}', space=vmem, size = 0x4000, scoped, tag = 'input window, operand 0']
    #allocation3 [shape = 's32[2]{0}', space=sflag, size = 0x8, scoped, tag = 'scoped memory for tpu_custom_call.1']
    #allocation4 [shape = 's32[2]{0}', space=sflag, size = 0x8, scoped, tag = 'scoped memory for tpu_custom_call.1']
    #allocation5 [shape = 'u8[16384]{0}', space=vmem, size = 0x4000, scoped, tag = 'output window, operand 0']
    %10 = vsyncpa [#allocation3], 0
    %s11 = scalar_lea.sflag [#allocation3], 1
    %12 = vsyncpa %s11, 0
    %13 = vsyncpa [#allocation4], 0
    %s14 = scalar_lea.sflag [#allocation4], 1
    %15 = vsyncpa %s14, 0
    loop: start=0, step=1, limit=4
    $region2: #{tpu_custom_call.1} parent=1 // loop_pre_header
      _
    $region3: #{tpu_custom_call.1} parent=1 // loop_header
      %s17 = sphi 0, %s21
      %p18 = scmp.ge.s32.totalorder %s17, 4
      %s27 = sphi 0, %s29
      %s30 = sphi 0, %s27
      %s31 = sphi 0, %s30
      %s47 = sphi 0, %s31
      %s51 = sphi 0, %s51
      %s53 = sphi 0, %s51
      %s54 = sphi 0, %s53
      %s68 = sphi 0, %s54
      %s72 = sphi 0, %s72
      %s74 = sphi 0, %s72
      %s75 = sphi 0, %s74
      %s89 = sphi 0, %s75
      %s93 = sphi 0, %s93
      %s95 = sphi 0, %s93
      %s96 = sphi 0, %s95
      %s110 = sphi 0, %s96
      %s114 = sphi 0, %s114
      %s116 = sphi 0, %s114
      %s117 = sphi 0, %s116
      %s131 = sphi 0, %s117
      %s137 = sphi 0, %s139
      %s140 = sphi 0, %s137
      %s141 = sphi 0, %s140
      %s157 = sphi 0, %s141
    $region4: #{tpu_custom_call.1} parent=1 // loop_header_branch
      %20 = sbr.rel (%p18) target = $region8
    $region5: #{tpu_custom_call.1} parent=1 // loop_body
      %s22 = ssub.s32 %s17, 1
      %s23 = ssub.s32 %s17, 2
      %s24 = sadd.s32 %s17, 1
      %s25 = ssub.s32 %s17, %s24
      %p26 = scmp.eq.s32.totalorder %s25, 0
      %s28 = sadd.s32 %s27, 1
      %s29 = scalar_select %p26, %s27, %s28
      %p32 = pneg %p26
      %p33 = scmp.eq.s32.totalorder %s17, 1
      %p34 = por %p32, %p33
      %p35 = scmp.ne.s32.totalorder %s27, %s30
      %p36 = scmp.eq.s32.totalorder %s17, 0
      %p37 = por %p35, %p36
      %p38 = scmp.ne.s32.totalorder %s27, %s30
      %p39 = scmp.eq.s32.totalorder %s22, 1
      %p40 = por %p38, %p39
      %p41 = scmp.ne.s32.totalorder %s30, %s31
      %p42 = scmp.eq.s32.totalorder %s22, 0
      %p43 = por %p41, %p42
      %p44 = scmp.ne.s32.totalorder %s30, %s31
      %p45 = scmp.eq.s32.totalorder %s23, 1
      %p46 = por %p44, %p45
      %p48 = scmp.ne.s32.totalorder %s31, %s47
      %p49 = scmp.eq.s32.totalorder %s23, 0
      %p50 = por %p48, %p49
      %s52 = sadd.s32 %s51, 1
      %p55 = scmp.eq.s32.totalorder %s17, 1
      %p56 = scmp.ne.s32.totalorder %s51, %s53
      %p57 = scmp.eq.s32.totalorder %s17, 0
      %p58 = por %p56, %p57
      %p59 = scmp.ne.s32.totalorder %s51, %s53
      %p60 = scmp.eq.s32.totalorder %s22, 1
      %p61 = por %p59, %p60
      %p62 = scmp.ne.s32.totalorder %s53, %s54
      %p63 = scmp.eq.s32.totalorder %s22, 0
      %p64 = por %p62, %p63
      %p65 = scmp.ne.s32.totalorder %s53, %s54
      %p66 = scmp.eq.s32.totalorder %s23, 1
      %p67 = por %p65, %p66
      %p69 = scmp.ne.s32.totalorder %s54, %s68
      %p70 = scmp.eq.s32.totalorder %s23, 0
      %p71 = por %p69, %p70
      %s73 = sadd.s32 %s72, 1
      %p76 = scmp.eq.s32.totalorder %s17, 1
      %p77 = scmp.ne.s32.totalorder %s72, %s74
      %p78 = scmp.eq.s32.totalorder %s17, 0
      %p79 = por %p77, %p78
      %p80 = scmp.ne.s32.totalorder %s72, %s74
      %p81 = scmp.eq.s32.totalorder %s22, 1
      %p82 = por %p80, %p81
      %p83 = scmp.ne.s32.totalorder %s74, %s75
      %p84 = scmp.eq.s32.totalorder %s22, 0
      %p85 = por %p83, %p84
      %p86 = scmp.ne.s32.totalorder %s74, %s75
      %p87 = scmp.eq.s32.totalorder %s23, 1
      %p88 = por %p86, %p87
      %p90 = scmp.ne.s32.totalorder %s75, %s89
      %p91 = scmp.eq.s32.totalorder %s23, 0
      %p92 = por %p90, %p91
      %s94 = sadd.s32 %s93, 1
      %p97 = scmp.eq.s32.totalorder %s17, 1
      %p98 = scmp.ne.s32.totalorder %s93, %s95
      %p99 = scmp.eq.s32.totalorder %s17, 0
      %p100 = por %p98, %p99
      %p101 = scmp.ne.s32.totalorder %s93, %s95
      %p102 = scmp.eq.s32.totalorder %s22, 1
      %p103 = por %p101, %p102
      %p104 = scmp.ne.s32.totalorder %s95, %s96
      %p105 = scmp.eq.s32.totalorder %s22, 0
      %p106 = por %p104, %p105
      %p107 = scmp.ne.s32.totalorder %s95, %s96
      %p108 = scmp.eq.s32.totalorder %s23, 1
      %p109 = por %p107, %p108
      %p111 = scmp.ne.s32.totalorder %s96, %s110
      %p112 = scmp.eq.s32.totalorder %s23, 0
      %p113 = por %p111, %p112
      %s115 = sadd.s32 %s114, 1
      %p118 = scmp.eq.s32.totalorder %s17, 1
      %p119 = scmp.ne.s32.totalorder %s114, %s116
      %p120 = scmp.eq.s32.totalorder %s17, 0
      %p121 = por %p119, %p120
      %p122 = scmp.ne.s32.totalorder %s114, %s116
      %p123 = scmp.eq.s32.totalorder %s22, 1
      %p124 = por %p122, %p123
      %p125 = scmp.ne.s32.totalorder %s116, %s117
      %p126 = scmp.eq.s32.totalorder %s22, 0
      %p127 = por %p125, %p126
      %p128 = scmp.ne.s32.totalorder %s116, %s117
      %p129 = scmp.eq.s32.totalorder %s23, 1
      %p130 = por %p128, %p129
      %p132 = scmp.ne.s32.totalorder %s117, %s131
      %p133 = scmp.eq.s32.totalorder %s23, 0
      %p134 = por %p132, %p133
      %s135 = ssub.s32 %s17, %s24
      %p136 = scmp.eq.s32.totalorder %s135, 0
      %s138 = sadd.s32 %s137, 1
      %s139 = scalar_select %p136, %s137, %s138
      %p142 = pneg %p136
      %p143 = scmp.eq.s32.totalorder %s17, 1
      %p144 = por %p142, %p143
      %p145 = scmp.ne.s32.totalorder %s137, %s140
      %p146 = scmp.eq.s32.totalorder %s17, 0
      %p147 = por %p145, %p146
      %p148 = scmp.ne.s32.totalorder %s137, %s140
      %p149 = scmp.eq.s32.totalorder %s22, 1
      %p150 = por %p148, %p149
      %p151 = scmp.ne.s32.totalorder %s140, %s141
      %p152 = scmp.eq.s32.totalorder %s22, 0
      %p153 = por %p151, %p152
      %p154 = scmp.ne.s32.totalorder %s140, %s141
      %p155 = scmp.eq.s32.totalorder %s23, 1
      %p156 = por %p154, %p155
      %p158 = scmp.ne.s32.totalorder %s141, %s157
      %p159 = scmp.eq.s32.totalorder %s23, 0
      %p160 = por %p158, %p159
      %p161 = scmp.le.s32.totalorder 1, %s17
      %p162 = scmp.lt.s32.totalorder %s17, 3
      %p163 = pnand %p161, %p162
      %p164 = pneg %p163
      // Predicated region
      $region9: #{tpu_custom_call.1} parent=5 // pred_check
        _
      $region10: #{tpu_custom_call.1} parent=5 // pred_check_branch
        %166 = sbr.rel (%p163) target = $region12
      $region11: #{tpu_custom_call.1} parent=5 // pred_region
        %s167 = ssub.s32 %s17, 1
        // Predicated region
        $region13: #{tpu_custom_call.1} parent=11 // pred_check
          %p168 = pneg %p64
        $region14: #{tpu_custom_call.1} parent=11 // pred_check_branch
          %170 = sbr.rel (%p168) target = $region16
        $region15: #{tpu_custom_call.1} parent=11 // pred_region
          _
        $region16: #{tpu_custom_call.1} parent=11 // pred_fallthru
          _
        // Predicated region
        $region17: #{tpu_custom_call.1} parent=11 // pred_check
          %p171 = pneg %p85
        $region18: #{tpu_custom_call.1} parent=11 // pred_check_branch
          %173 = sbr.rel (%p171) target = $region20
        $region19: #{tpu_custom_call.1} parent=11 // pred_region
          _
        $region20: #{tpu_custom_call.1} parent=11 // pred_fallthru
          _
        // Predicated region
        $region21: #{tpu_custom_call.1} parent=11 // pred_check
          %p174 = pneg %p106
        $region22: #{tpu_custom_call.1} parent=11 // pred_check_branch
          %176 = sbr.rel (%p174) target = $region24
        $region23: #{tpu_custom_call.1} parent=11 // pred_region
          _
        $region24: #{tpu_custom_call.1} parent=11 // pred_fallthru
          _
        // Predicated region
        $region25: #{tpu_custom_call.1} parent=11 // pred_check
          %p177 = pneg %p127
        $region26: #{tpu_custom_call.1} parent=11 // pred_check_branch
          %179 = sbr.rel (%p177) target = $region28
        $region27: #{tpu_custom_call.1} parent=11 // pred_region
          _
        $region28: #{tpu_custom_call.1} parent=11 // pred_fallthru
          _
      $region12: #{tpu_custom_call.1} parent=5 // pred_fallthru
        _
      %p180 = scmp.lt.s32.totalorder %s17, 2
      // Predicated region
      $region29: #{tpu_custom_call.1} parent=5 // pred_check
        %p181 = pneg %p180
      $region30: #{tpu_custom_call.1} parent=5 // pred_check_branch
        %183 = sbr.rel (%p181) target = $region32
      $region31: #{tpu_custom_call.1} parent=5 // pred_region
        // Predicated region
        $region33: #{tpu_custom_call.1} parent=31 // pred_check
          %p184 = pneg %p37
        $region34: #{tpu_custom_call.1} parent=31 // pred_check_branch
          %186 = sbr.rel (%p184) target = $region36
        $region35: #{tpu_custom_call.1} parent=31 // pred_region
          %s187 = sand.u32 %s27, 1
          %s188 = scalar_lea.sflag [#allocation3], %s187
          %s189 = sand.u32 %s27, 1
          %s190 = smul.addr %s189, 16
          %s191 = scalar_lea.vmem [#allocation2], %s190
          %193 = vsyncadd %s188, 0
          %s194 = smul.addr %s17, 2
          %s195 = smul.addr %s194, 8
          %s196 = scalar_lea.hbm %s0, %s195
          %s198 = sshll.u32 %s196, 4
          %s199 = int_to_ptr.hbm [resolvable:$true] %s198
          %s200 = sshll.u32 %s191, 4
          %s201 = int_to_ptr.vmem [resolvable:$true] %s200
          %203 = dma.hbm_to_vmem [thread:$0]  %s199, 256, %s201, %s188
        $region36: #{tpu_custom_call.1} parent=31 // pred_fallthru
          _
      $region32: #{tpu_custom_call.1} parent=5 // pred_fallthru
        _
      %p204 = scmp.le.s32.totalorder 1, %s17
      %p205 = scmp.lt.s32.totalorder %s17, 3
      %p206 = pnand %p204, %p205
      %p207 = pneg %p206
      // Predicated region
      $region37: #{tpu_custom_call.1} parent=5 // pred_check
        _
      $region38: #{tpu_custom_call.1} parent=5 // pred_check_branch
        %209 = sbr.rel (%p206) target = $region40
      $region39: #{tpu_custom_call.1} parent=5 // pred_region
        %s210 = ssub.s32 %s17, 1
        %s211 = sand.u32 %s30, 1
        %s212 = scalar_lea.sflag [#allocation3], %s211
        %s213 = sand.u32 %s30, 1
        %s214 = smul.addr %s213, 16
        %s215 = scalar_lea.vmem [#allocation2], %s214
        // Predicated region
        $region41: #{tpu_custom_call.1} parent=39 // pred_check
          %p216 = pneg %p43
        $region42: #{tpu_custom_call.1} parent=39 // pred_check_branch
          %218 = sbr.rel (%p216) target = $region44
        $region43: #{tpu_custom_call.1} parent=39 // pred_region
          %220 = dma.done %s212, 256
        $region44: #{tpu_custom_call.1} parent=39 // pred_fallthru
          _
        %s221 = sand.u32 %s30, 1
        %s222 = scalar_lea.sflag [#allocation3], %s221
        %s223 = sand.u32 %s30, 1
        %s224 = smul.addr %s223, 16
        %s225 = scalar_lea.vmem [#allocation2], %s224
        %p226 = pneg %p43
        %p227 = pneg %p40
        %p228 = pneg %p64
        %p229 = pneg %p61
        %p230 = pneg %p85
        %p231 = pneg %p82
        %p232 = pneg %p106
        %p233 = pneg %p103
        %p234 = pneg %p127
        %p235 = pneg %p124
        %p236 = pneg %p153
        %p237 = pneg %p150
        %s238 = sand.u32 %s140, 1
        %s239 = scalar_lea.sflag [#allocation4], %s238
        %s240 = sand.u32 %s140, 1
        %s241 = smul.addr %s240, 16
        %s242 = scalar_lea.vmem [#allocation5], %s241
        %v243 = vld [vmem:[%s215] sm:$0xff]
        %v244 = vld [vmem:[%s215 + $0x8] sm:$0xff]
        %v245 = vadd.f32 %v243, %v244
        %246 = vadd.xlane.f32.xlu0 %v245
        %v247 = vpop.xlane.xlu0 %246
        %v248 = vmul.f32 %v247, 0.00390625
        %v249 = vld [vmem:[%s1] sm:$0xff]
        %v250 = vmul.f32 %v248, %v249
        %vm251 = vcmask 15360
        %v252 = vsel %vm251, %v250, 0.0
        %v253 = vrot.slane %v252, 4
        %v254 = vadd.f32 %v252, %v253
        %v255 = vrot.slane %v254, 2
        %v256 = vadd.f32 %v254, %v255
        %v257 = vrot.slane %v256, 1
        %v258 = vadd.f32 %v256, %v257
        %v259 = vld [vmem:[%s2] sm:$0x1]
        %v260 = vadd.f32 %v258, %v259
        %v261 = vmax.f32 %v260, 0.0
        %v262 = vmin.f32 %v261, 6.0
        %v263 = vld [vmem:[%s3] sm:$0xff]
        %v264 = vperm.slane %v262, 0
        %v265 = vmul.f32 %v264, %v263
        %v266 = vsel %vm251, %v265, 0.0
        %267 = vadd.xlane.f32.xlu0 %v266
        %v268 = vpop.xlane.xlu0 %267
        %v269 = vld [vmem:[%s4] sm:$0xff]
        %v270 = vadd.f32 %v268, %v269
        %v271 = vxor.u32 %v270, 2147483648
        %v272 = vmul.f32 %v271, 1.442695
        %v273 = vpow.pop %v272
        %v274 = vadd.f32 %v273, 1.0
        %v275 = vrcp.pop %v274
        %v276 = vmul.f32 %v274, %v275
        %v277 = vsub.f32 1.0, %v276
        %v278 = vmul.f32 %v275, %v277
        %v279 = vadd.f32 %v275, %v278
        %vm280 = vweird.f32 %v274
        %vm281 = vweird.f32 %v275
        %vm282 = vmor %vm280, %vm281
        %v283 = vsel %vm282, %v275, %v279
        %v284 = vand.u32 2147483647, %v274
        %vm285 = vcmp.eq.f32.partialorder %v284, 8.507059e+37
        %v286 = vand.u32 %v274, 2147483648
        %v287 = vor.u32 1.1754944e-38, %v286
        %v288 = vsel %vm285, %v287, %v283
        %v289 = vmul.f32 1.0, %v288
        %291 = vset.pattern.permute.xlu0 0
        %292 = vperm.xlu0 %291, %v289
        %v293 = vpop.permute.xlu0 %292
        %v295 = vmul.f32 %v243, %v293
        %v296 = vmul.f32 %v244, %v293
        %297 = vst [vmem:[%s242] sm:$0xff] %v295
        %298 = vst [vmem:[%s242 + $0x8] sm:$0xff] %v296
        %s299 = sand.u32 %s140, 1
        %s300 = scalar_lea.sflag [#allocation4], %s299
        %s301 = sand.u32 %s140, 1
        %s302 = smul.addr %s301, 16
        %s303 = scalar_lea.vmem [#allocation5], %s302
        // Predicated region
        $region45: #{tpu_custom_call.1} parent=39 // pred_check
          %p304 = pneg %p150
        $region46: #{tpu_custom_call.1} parent=39 // pred_check_branch
          %306 = sbr.rel (%p304) target = $region48
        $region47: #{tpu_custom_call.1} parent=39 // pred_region
          %308 = vsyncadd %s300, 0
          %s309 = smul.addr %s22, 2
          %s310 = smul.addr %s309, 8
          %s311 = scalar_lea.hbm %s5, %s310
          %s313 = sshll.u32 %s303, 4
          %s314 = int_to_ptr.vmem [resolvable:$true] %s313
          %s315 = sshll.u32 %s311, 4
          %s316 = int_to_ptr.hbm [resolvable:$true] %s315
          %318 = dma.vmem_to_hbm [thread:$0]  %s314, 256, %s316, %s300
        $region48: #{tpu_custom_call.1} parent=39 // pred_fallthru
          _
      $region40: #{tpu_custom_call.1} parent=5 // pred_fallthru
        _
      %p319 = scmp.le.s32.totalorder 2, %s17
      // Predicated region
      $region49: #{tpu_custom_call.1} parent=5 // pred_check
        %p320 = pneg %p319
      $region50: #{tpu_custom_call.1} parent=5 // pred_check_branch
        %322 = sbr.rel (%p320) target = $region52
      $region51: #{tpu_custom_call.1} parent=5 // pred_region
        %s323 = ssub.s32 %s17, 2
        // Predicated region
        $region53: #{tpu_custom_call.1} parent=51 // pred_check
          %p324 = pneg %p156
        $region54: #{tpu_custom_call.1} parent=51 // pred_check_branch
          %326 = sbr.rel (%p324) target = $region56
        $region55: #{tpu_custom_call.1} parent=51 // pred_region
          %s327 = sand.u32 %s141, 1
          %s328 = scalar_lea.sflag [#allocation4], %s327
          %s329 = sand.u32 %s141, 1
          %s330 = smul.addr %s329, 16
          %s331 = scalar_lea.vmem [#allocation5], %s330
          %333 = dma.done %s328, 256
        $region56: #{tpu_custom_call.1} parent=51 // pred_fallthru
          _
      $region52: #{tpu_custom_call.1} parent=5 // pred_fallthru
        _
    $region6: #{tpu_custom_call.1} parent=1 // loop_footer
      %s21 = sadd.s32 1, %s17
    $region7: #{tpu_custom_call.1} parent=1 // loop_footer_branch
      %16 = sbr.rel target = $region3
    $region8: #{tpu_custom_call.1} parent=1 // loop_exit
      _
    %334 = vsyncpa [#allocation3], 1
    %s335 = scalar_lea.sflag [#allocation3], 1
    %336 = vsyncpa %s335, 1
    %337 = vsyncpa [#allocation4], 1
    %s338 = scalar_lea.sflag [#allocation4], 1
    %339 = vsyncpa %s338, 1

</llo_original>
